<compile_context>
chip_gen: v7x
topology: tpu7x:2x2x1
jax: 0.10.0
libtpu: 0.0.40
codegen_flags: <defaults>
</compile_context>

<pallas_src>
from functools import partial

import jax
import jax.numpy as jnp
from jax.experimental import pallas as pl
from jax.experimental.pallas import tpu as pltpu

LANE = 128   # vreg lane width
SUB = 8      # vreg sublane count


def linear_kernel(w_ref, b_ref, x_ref, o_ref):
    # w_ref: SMEM (3,) f32, b_ref: SMEM (1,) f32
    # x_ref: VMEM (3, TR, 128)  (batch dense on sublanes+lanes)
    # o_ref: VMEM (TR, 128)
    acc = (x_ref[0] * w_ref[0]          # unrolled VPU FMAs, scalar broadcast
           + x_ref[1] * w_ref[1]
           + x_ref[2] * w_ref[2]
           + b_ref[0])
    o_ref[...] = acc.astype(o_ref.dtype)


@partial(jax.jit, static_argnames=("max_tb",))
def simple_model_forward(x, weight, bias, *, max_tb=131072):
    """x: (B, 3) f32, weight: (1, 3) f32 (PyTorch layout), bias: (1,) f32 -> (B, 1)"""
    B, K = x.shape
    assert K == 3 and weight.shape == (1, K) and bias.shape == (1,)

    w_flat = weight.reshape(K)           # (3,)  -> SMEM (1D: no 8x128 pad)
    b_flat = bias.reshape(1)             # (1,)  -> SMEM

    # --- tile selection ------------------------------------------------------
    # Batch is laid out as (R, 128) with R a multiple of 8 (fully dense vregs).
    # TR = rows per grid step (multiple of 8); per-step traffic ~= 4*TR*128*4 B.
    R = pl.cdiv(B, LANE)
    R = pl.cdiv(R, SUB) * SUB                       # sublane-dense rows
    max_tr = max(SUB, (max_tb // LANE // SUB) * SUB)  # rounds max_tb safely
    TR = min(R, max_tr)
    # v7x megacore: keep >= 2 "parallel" grid steps when the batch is big
    # enough so both TensorCores get work (no-op on v5e/v6e).
    if R >= 2 * SUB and TR >= R:
        TR = (R // 2 // SUB) * SUB
    R = pl.cdiv(R, TR) * TR                         # so grid divides evenly
    B_pad = R * LANE
    grid = (R // TR,)

    # --- layout plumbing (single fused transpose+pad+reshape) ---------------
    # (B, 3) -> (3, R, 128): batch index b lives at (row b//128, lane b%128).
    # Zero-padded columns produce `bias` in the output and are sliced off.
    x_t = jnp.pad(x.T, ((0, 0), (0, B_pad - B))).reshape(K, R, LANE)

    out_t = pl.pallas_call(
        linear_kernel,
        out_shape=jax.ShapeDtypeStruct((R, LANE), x.dtype),
        grid=grid,
        in_specs=[
            pl.BlockSpec(memory_space=pltpu.SMEM),              # w (3,)
            pl.BlockSpec(memory_space=pltpu.SMEM),              # b (1,)
            pl.BlockSpec((K, TR, LANE), lambda i: (0, i, 0)),   # x tile
        ],
        out_specs=pl.BlockSpec((TR, LANE), lambda i: (i, 0)),
        compiler_params=pltpu.CompilerParams(
            dimension_semantics=("parallel",)),
    )(w_flat, b_flat, x_t)

    # Back to PyTorch Linear output layout (B, 1).
    return out_t.reshape(B_pad)[:B].reshape(B, 1)


if __name__ == "__main__":
    key = jax.random.PRNGKey(0)
    k_x, k_w, k_b = jax.random.split(key, 3)

    B, IN, OUT = 8, 3, 1
    x = jax.random.normal(k_x, (B, IN), dtype=jnp.float32)

    # Deterministic parameter init (mimics nn.Linear's uniform(-1/sqrt(in), 1/sqrt(in)))
    bound = 1.0 / jnp.sqrt(jnp.float32(IN))
    weight = jax.random.uniform(k_w, (OUT, IN), jnp.float32, -bound, bound)
    bias = jax.random.uniform(k_b, (OUT,), jnp.float32, -bound, bound)

    y = simple_model_forward(x, weight, bias)
    jax.block_until_ready(y)

    # Correctness check against plain JAX reference.
    y_ref = x @ weight.T + bias
    assert y.shape == (B, OUT)
    assert jnp.allclose(y, y_ref, atol=1e-5, rtol=1e-5)

    # Larger-batch check exercising multi-step grid + megacore path.
    B2 = 4096 + 37
    x2 = jax.random.normal(k_x, (B2, IN), dtype=jnp.float32)
    y2 = simple_model_forward(x2, weight, bias)
    jax.block_until_ready(y2)
    assert jnp.allclose(y2, x2 @ weight.T + bias, atol=1e-5, rtol=1e-5)

    print("KERNEL_OK")
</pallas_src>

<mosaic_0001>
module attributes {stable_mosaic.version = 11 : i64} {
  func.func @linear_kernel(%arg0: i32, %arg1: memref<3xf32, #tpu.memory_space<smem>>, %arg2: memref<1xf32, #tpu.memory_space<smem>>, %arg3: memref<3x8x128xf32, #tpu.memory_space<vmem>>, %arg4: memref<8x128xf32, #tpu.memory_space<vmem>>) attributes {dimension_semantics = [#tpu.dimension_semantics<parallel>], iteration_bounds = array<i64: 1>, scalar_prefetch = 0 : i64, scratch_operands = 0 : i64, tpu.core_type = #tpu.core_type<tc>, window_params = [{transform_indices = @transform_0, window_bounds = array<i64: 3>}, {transform_indices = @transform_1, window_bounds = array<i64: 1>}, {transform_indices = @transform_2, window_bounds = array<i64: 3, 8, 128>}, {transform_indices = @transform_3, window_bounds = array<i64: 8, 128>}]} {
    %c0 = arith.constant 0 : index
    %c0_0 = arith.constant 0 : index
    %c0_1 = arith.constant 0 : index
    %0 = vector.load %arg3[%c0, %c0_0, %c0_1] : memref<3x8x128xf32, #tpu.memory_space<vmem>>, vector<1x8x128xf32>
    %1 = vector.shape_cast %0 : vector<1x8x128xf32> to vector<8x128xf32>
    %c0_2 = arith.constant 0 : index
    %2 = memref.load %arg1[%c0_2] : memref<3xf32, #tpu.memory_space<smem>>
    %3 = vector.broadcast %2 : f32 to vector<8x128xf32>
    %4 = arith.mulf %1, %3 : vector<8x128xf32>
    %c1 = arith.constant 1 : index
    %c0_3 = arith.constant 0 : index
    %c0_4 = arith.constant 0 : index
    %5 = vector.load %arg3[%c1, %c0_3, %c0_4] : memref<3x8x128xf32, #tpu.memory_space<vmem>>, vector<1x8x128xf32>
    %6 = vector.shape_cast %5 : vector<1x8x128xf32> to vector<8x128xf32>
    %c1_5 = arith.constant 1 : index
    %7 = memref.load %arg1[%c1_5] : memref<3xf32, #tpu.memory_space<smem>>
    %8 = vector.broadcast %7 : f32 to vector<8x128xf32>
    %9 = arith.mulf %6, %8 : vector<8x128xf32>
    %10 = arith.addf %4, %9 : vector<8x128xf32>
    %c2 = arith.constant 2 : index
    %c0_6 = arith.constant 0 : index
    %c0_7 = arith.constant 0 : index
    %11 = vector.load %arg3[%c2, %c0_6, %c0_7] : memref<3x8x128xf32, #tpu.memory_space<vmem>>, vector<1x8x128xf32>
    %12 = vector.shape_cast %11 : vector<1x8x128xf32> to vector<8x128xf32>
    %c2_8 = arith.constant 2 : index
    %13 = memref.load %arg1[%c2_8] : memref<3xf32, #tpu.memory_space<smem>>
    %14 = vector.broadcast %13 : f32 to vector<8x128xf32>
    %15 = arith.mulf %12, %14 : vector<8x128xf32>
    %16 = arith.addf %10, %15 : vector<8x128xf32>
    %c0_9 = arith.constant 0 : index
    %17 = memref.load %arg2[%c0_9] : memref<1xf32, #tpu.memory_space<smem>>
    %18 = vector.broadcast %17 : f32 to vector<8x128xf32>
    %19 = arith.addf %16, %18 : vector<8x128xf32>
    %c0_10 = arith.constant 0 : index
    %c0_11 = arith.constant 0 : index
    %20 = vector.load %arg4[%c0_10, %c0_11] : memref<8x128xf32, #tpu.memory_space<vmem>>, vector<8x128xf32>
    tpu.vector_store %arg4[%c0_10, %c0_11], %19 {strides = array<i32>} : memref<8x128xf32, #tpu.memory_space<vmem>>, vector<8x128xf32>,
    return
  }
  func.func @transform_0(%arg0: i32) -> i32 {
    %c0_i32 = arith.constant 0 : i32
    %c0_i32_0 = arith.constant 0 : i32
    return %c0_i32 : i32
  }
  func.func @transform_1(%arg0: i32) -> i32 {
    %c0_i32 = arith.constant 0 : i32
    %c0_i32_0 = arith.constant 0 : i32
    return %c0_i32 : i32
  }
  func.func @transform_2(%arg0: i32) -> (i32, i32, i32) {
    %c0_i32 = arith.constant 0 : i32
    %c0_i32_0 = arith.constant 0 : i32
    %c0_i32_1 = arith.constant 0 : i32
    return %c0_i32, %arg0, %c0_i32_0 : i32, i32, i32
  }
  func.func @transform_3(%arg0: i32) -> (i32, i32) {
    %c0_i32 = arith.constant 0 : i32
    %c0_i32_0 = arith.constant 0 : i32
    return %arg0, %c0_i32 : i32, i32
  }
}

</mosaic_0001>

<llo_original>
// kernel: simple_model_forward.1
$region0: #{simple_model_forward.1}
  #allocation0 [shape = 'u32[]', space=smem, size = 0x4, offset = 0x4, fixed_abs, tag = 'smem constant byte address 0x4 - core index']
  #allocation1 [shape = 'u32[144,128]{1,0:T(1,128)}', space=vmem, size = 0x12000, scoped, tag = 'internal scratch']
  #allocation2 [shape = 'f32[1]{0:T(128)S(6)}', space=smem, size = 0x200, scoped, tag = 'scoped memory for simple_model_forward.1']
  %s0 = inlined_call_operand.vmem [shape: f32[3], index: 0, kind: input, shape index: {}]
  %s1 = inlined_call_operand.<no memory space> [shape: f32[1], index: 1, kind: input, shape index: {}]
  %s2 = inlined_call_operand.vmem [shape: f32[3,8,128], index: 2, kind: input, shape index: {}]
  %s3 = inlined_call_operand.vmem [shape: f32[8,128], index: 3, kind: output, shape index: {}]
  %s4 = sld [smem:[#allocation0]]
  $region26: #{simple_model_forward.1} parent=0
    _
  %s6 = ssub.s32 1, %s4
  %s7 = scalar_select 0, %s6, %s4
  %8 = sst [smem:[#allocation2]] %s1
  $region1: #{simple_model_forward.1} parent=0
    #allocation3 [shape = 'u8[512]{0}', space=smem, size = 0x200, scoped, tag = 'input window, operand 0, single buffered']
    #allocation4 [shape = 's32[1]{0}', space=sflag, size = 0x4, scoped, tag = 'scoped memory for simple_model_forward.1']
    %9 = vsyncpa [#allocation4], 0
    // Predicated region
    $region2: #{simple_model_forward.1} parent=1 // pred_check
      _
    $region3: #{simple_model_forward.1} parent=1 // pred_check_branch
      %11 = sbr.rel (0) target = $region5
    $region4: #{simple_model_forward.1} parent=1 // pred_region
      %s13 = ssub.s32 16, 16
      %14 = vsyncadd [#allocation4], %s13
      %s16 = sshll.u32 %s0, 4
      %s17 = int_to_ptr.vmem [resolvable:$true] %s16
      %19 = dma.vmem_to_smem %s17, 16, [#allocation3], [#allocation4]
    $region5: #{simple_model_forward.1} parent=1 // pred_fallthru
      _
    // Predicated region
    $region6: #{simple_model_forward.1} parent=1 // pred_check
      _
    $region7: #{simple_model_forward.1} parent=1 // pred_check_branch
      %21 = sbr.rel (0) target = $region9
    $region8: #{simple_model_forward.1} parent=1 // pred_region
      _
    $region9: #{simple_model_forward.1} parent=1 // pred_fallthru
      _
    // Predicated region
    $region10: #{simple_model_forward.1} parent=1 // pred_check
      _
    $region11: #{simple_model_forward.1} parent=1 // pred_check_branch
      %23 = sbr.rel (0) target = $region13
    $region12: #{simple_model_forward.1} parent=1 // pred_region
      _
    $region13: #{simple_model_forward.1} parent=1 // pred_fallthru
      _
    // Predicated region
    $region14: #{simple_model_forward.1} parent=1 // pred_check
      _
    $region15: #{simple_model_forward.1} parent=1 // pred_check_branch
      %25 = sbr.rel (0) target = $region17
    $region16: #{simple_model_forward.1} parent=1 // pred_region
      %26 = dma.done [#allocation4], 16
    $region17: #{simple_model_forward.1} parent=1 // pred_fallthru
      _
    %27 = sfence
    %v28 = vld [vmem:[%s2] sm:$0xff]
    %s29 = sld [smem:[#allocation3]]
    %v30 = vstv %s29
    %v31 = vmul.f32 %v28, %v30
    %s32 = scalar_lea.vmem %s2, 8
    %v33 = vld [vmem:[%s32] sm:$0xff]
    %s34 = sld [smem:[#allocation3 + $0x1]]
    %v35 = vstv %s34
    %v36 = vmul.f32 %v33, %v35
    %v37 = vadd.f32 %v31, %v36
    %s38 = scalar_lea.vmem %s2, 16
    %v39 = vld [vmem:[%s38] sm:$0xff]
    %s40 = sld [smem:[#allocation3 + $0x2]]
    %v41 = vstv %s40
    %v42 = vmul.f32 %v39, %v41
    %v43 = vadd.f32 %v37, %v42
    %s44 = sld [smem:[#allocation2]]
    %v45 = vstv %s44
    %v46 = vadd.f32 %v43, %v45
    %47 = vst [vmem:[%s3] sm:$0xff] %v46
    // Predicated region
    $region18: #{simple_model_forward.1} parent=1 // pred_check
      _
    $region19: #{simple_model_forward.1} parent=1 // pred_check_branch
      %49 = sbr.rel (0) target = $region21
    $region20: #{simple_model_forward.1} parent=1 // pred_region
      _
    $region21: #{simple_model_forward.1} parent=1 // pred_fallthru
      _
    // Predicated region
    $region22: #{simple_model_forward.1} parent=1 // pred_check
      _
    $region23: #{simple_model_forward.1} parent=1 // pred_check_branch
      %51 = sbr.rel (0) target = $region25
    $region24: #{simple_model_forward.1} parent=1 // pred_region
      _
    $region25: #{simple_model_forward.1} parent=1 // pred_fallthru
      _
    %52 = vsyncpa [#allocation4], 1

</llo_original>
